<compile_context>
chip_gen: v7x
topology: tpu7x:2x2x1
jax: 0.10.0
libtpu: 0.0.40
codegen_flags: <defaults>
</compile_context>

<pallas_src>
import functools

import jax
import jax.numpy as jnp
from jax.experimental import pallas as pl
from jax.experimental.pallas import tpu as pltpu

OBJ_EMB_DIM = 256
EEF_DIM = 3
OUT_EMB_DIM = 128
NEG_SLOPE = 0.01  # F.leaky_relu default

TILE_ROWS = 2048  # ~8.5 MiB of double-buffered VMEM (obj f32 dominates); fits
                  # v5e/v6e/v7x once vmem_limit_bytes is raised to 32 MiB.


def _leaky_relu(x):
    # max(x, a*x) == leaky_relu(x) for 0 < a < 1; 2 VALU ops instead of
    # cmp+mul+select (3).
    return jnp.maximum(x, NEG_SLOPE * x)


def _round_up(x, m):
    return ((x + m - 1) // m) * m


def _pick_tile(n):
    """Row-tile: <= TILE_ROWS, multiple of 16, and >= 2 grid steps when the
    problem is big enough (v7x has 2 TensorCores to shard the row axis)."""
    return min(TILE_ROWS, _round_up(max((n + 1) // 2, 16), 16))


def _traj_embedding_kernel(
    eef_ref, obj_ref,
    we1_ref, be1_ref,          # eef fc1:  (3,128) f32, (1,128) f32
    wo1_ref, bo1_ref,          # obj fc1:  (256,128) bf16, (1,128) f32
    w2e_ref, w2o_ref, b2_ref,  # fused fc2: (128,128) bf16 x2, (1,128) f32
    out_ref,
):
    """One row-tile of the fused forward pass."""
    # ---- eef branch, first layer on the MXU (K=3, f32; MXU has slack) ----
    h = jnp.dot(eef_ref[...], we1_ref[...],
                preferred_element_type=jnp.float32)        # (T, 128)
    h = _leaky_relu(h + be1_ref[...])

    # ---- obj branch, first layer on the MXU; f32->bf16 cast done in VMEM ----
    g = jnp.dot(obj_ref[...].astype(jnp.bfloat16), wo1_ref[...],
                preferred_element_type=jnp.float32)        # (T, 128)
    g = _leaky_relu(g + bo1_ref[...])

    # ---- fused second layer, no lane concat:
    #      o = h @ [we2 | 0] + g @ [0 | wo2]  (output lanes [0,64)=eef, [64,128)=obj)
    o = jnp.dot(h.astype(jnp.bfloat16), w2e_ref[...],
                preferred_element_type=jnp.float32)
    o = o + jnp.dot(g.astype(jnp.bfloat16), w2o_ref[...],
                    preferred_element_type=jnp.float32)
    o = _leaky_relu(o + b2_ref[...])                        # (T, 128)

    # single lane-dense 128-wide store == torch.cat((eef, obj), dim=-1)
    out_ref[...] = o.astype(out_ref.dtype)


def _init_linear(key, fan_in, fan_out):
    """PyTorch nn.Linear-style init: U(-1/sqrt(fan_in), 1/sqrt(fan_in)).
    Weight stored as (in, out) for x @ W."""
    kw, kb = jax.random.split(key)
    bound = 1.0 / jnp.sqrt(jnp.float32(fan_in))
    w = jax.random.uniform(kw, (fan_in, fan_out), jnp.float32, -bound, bound)
    b = jax.random.uniform(kb, (1, fan_out), jnp.float32, -bound, bound)
    return w, b


def make_params(key):
    k1, k2, k3, k4 = jax.random.split(key, 4)
    wo1, bo1 = _init_linear(k1, OBJ_EMB_DIM, OUT_EMB_DIM)          # obj_fc1
    wo2, bo2 = _init_linear(k2, OUT_EMB_DIM, OUT_EMB_DIM // 2)     # obj_fc2
    we1, be1 = _init_linear(k3, EEF_DIM, OUT_EMB_DIM)              # eef_fc1
    we2, be2 = _init_linear(k4, OUT_EMB_DIM, OUT_EMB_DIM // 2)     # eef_fc2
    return dict(we1=we1, be1=be1, we2=we2, be2=be2,
                wo1=wo1, bo1=bo1, wo2=wo2, bo2=bo2)


def _prepare_kernel_params(params):
    """Cast / fuse params for the kernel (tiny arrays, negligible cost)."""
    half = OUT_EMB_DIM // 2
    # eef second layer -> output lanes [0, 64); obj second layer -> [64, 128)
    w2e = jnp.zeros((OUT_EMB_DIM, OUT_EMB_DIM), jnp.float32)
    w2e = w2e.at[:, :half].set(params["we2"])
    w2o = jnp.zeros((OUT_EMB_DIM, OUT_EMB_DIM), jnp.float32)
    w2o = w2o.at[:, half:].set(params["wo2"])
    b2 = jnp.concatenate([params["be2"], params["bo2"]], axis=-1)   # (1, 128)
    return dict(
        we1=params["we1"].astype(jnp.float32),
        be1=params["be1"].astype(jnp.float32),
        wo1=params["wo1"].astype(jnp.bfloat16),
        bo1=params["bo1"].astype(jnp.float32),
        w2e=w2e.astype(jnp.bfloat16),
        w2o=w2o.astype(jnp.bfloat16),
        b2=b2.astype(jnp.float32),
    )


@functools.partial(jax.jit, static_argnames=("out_dtype",))
def traj_embedding(eef_traj, obj_emb, params, out_dtype=jnp.float32):
    """eef_traj: (..., 3), obj_emb: (..., 256) with identical leading dims.
    Returns (..., 128) in out_dtype (default float32)."""
    lead = eef_traj.shape[:-1]
    n = 1
    for d in lead:
        n *= d

    # No dtype casts, no padding, no post-slice in the wrapper: the kernel
    # streams f32 rows straight from HBM and handles the ragged tail itself.
    eef2d = eef_traj.reshape(n, EEF_DIM).astype(jnp.float32)
    obj2d = obj_emb.reshape(n, OBJ_EMB_DIM).astype(jnp.float32)

    tile = _pick_tile(n)
    grid = (pl.cdiv(n, tile),)

    kp = _prepare_kernel_params(params)

    row_spec = lambda feat: pl.BlockSpec((tile, feat), lambda i: (i, 0))
    w_spec = lambda shape: pl.BlockSpec(shape, lambda i: (0, 0))

    # Advisory cost hint: this call is bandwidth-dominated.
    flops_per_row = 2 * (OBJ_EMB_DIM * OUT_EMB_DIM
                         + EEF_DIM * OUT_EMB_DIM
                         + 2 * OUT_EMB_DIM * (OUT_EMB_DIM // 2))
    weight_bytes = (EEF_DIM * OUT_EMB_DIM * 4 + OUT_EMB_DIM * 4
                    + OBJ_EMB_DIM * OUT_EMB_DIM * 2 + OUT_EMB_DIM * 4
                    + 2 * OUT_EMB_DIM * OUT_EMB_DIM * 2 + OUT_EMB_DIM * 4)
    bytes_accessed = (n * (OBJ_EMB_DIM + EEF_DIM) * 4
                      + n * OUT_EMB_DIM * jnp.dtype(out_dtype).itemsize
                      + weight_bytes)
    cost = pl.CostEstimate(flops=n * flops_per_row, transcendentals=0,
                           bytes_accessed=bytes_accessed)

    out = pl.pallas_call(
        _traj_embedding_kernel,
        out_shape=jax.ShapeDtypeStruct((n, OUT_EMB_DIM), out_dtype),
        grid=grid,
        in_specs=[
            row_spec(EEF_DIM),                       # eef rows (f32)
            row_spec(OBJ_EMB_DIM),                   # obj rows (f32, cast in-kernel)
            w_spec((EEF_DIM, OUT_EMB_DIM)),          # we1
            w_spec((1, OUT_EMB_DIM)),                # be1
            w_spec((OBJ_EMB_DIM, OUT_EMB_DIM)),      # wo1 (bf16)
            w_spec((1, OUT_EMB_DIM)),                # bo1
            w_spec((OUT_EMB_DIM, OUT_EMB_DIM)),      # w2e (bf16, cols [0,64))
            w_spec((OUT_EMB_DIM, OUT_EMB_DIM)),      # w2o (bf16, cols [64,128))
            w_spec((1, OUT_EMB_DIM)),                # fused b2
        ],
        out_specs=row_spec(OUT_EMB_DIM),
        compiler_params=pltpu.CompilerParams(
            dimension_semantics=("parallel",),
            vmem_limit_bytes=32 * 1024 * 1024,
        ),
        cost_estimate=cost,
    )(
        eef2d, obj2d,
        kp["we1"], kp["be1"],
        kp["wo1"], kp["bo1"],
        kp["w2e"], kp["w2o"], kp["b2"],
    )
    return out.reshape(*lead, OUT_EMB_DIM)


def _reference(eef_traj, obj_emb, params):
    """Pure-JAX f32 reference mirroring the PyTorch forward."""
    lr = lambda x: jnp.where(x > 0, x, NEG_SLOPE * x)
    obj = lr(obj_emb @ params["wo1"] + params["bo1"][0])
    obj = lr(obj @ params["wo2"] + params["bo2"][0])
    eef = lr(eef_traj @ params["we1"] + params["be1"][0])
    eef = lr(eef @ params["we2"] + params["be2"][0])
    return jnp.concatenate([eef, obj], axis=-1)


if __name__ == "__main__":
    key = jax.random.PRNGKey(0)
    kp_, ke, ko, ke2, ko2 = jax.random.split(key, 5)

    params = make_params(kp_)

    # Small-shape check (single 16-row tile, grid of 1).
    batch, seq = 2, 8
    eef_traj = jax.random.normal(ke, (batch, seq, EEF_DIM), jnp.float32)
    obj_emb = jax.random.normal(ko, (batch, seq, OBJ_EMB_DIM), jnp.float32)

    out = traj_embedding(eef_traj, obj_emb, params)
    out = jax.block_until_ready(out)
    ref = _reference(eef_traj, obj_emb, params)
    assert out.shape == (batch, seq, OUT_EMB_DIM), out.shape
    # bf16 matmuls with f32 accumulation vs f32 reference -> loosened tolerance.
    assert jnp.allclose(out, ref, atol=2e-2, rtol=2e-2), "mismatch vs reference (small)"

    # Multi-tile check with a ragged tail (n = 2100 rows -> two ~1056-row tiles,
    # last block partially OOB; no padding / slicing in the wrapper).
    n_big = 2100
    eef_big = jax.random.normal(ke2, (n_big, EEF_DIM), jnp.float32)
    obj_big = jax.random.normal(ko2, (n_big, OBJ_EMB_DIM), jnp.float32)
    out_big = jax.block_until_ready(traj_embedding(eef_big, obj_big, params))
    ref_big = _reference(eef_big, obj_big, params)
    assert out_big.shape == (n_big, OUT_EMB_DIM), out_big.shape
    assert jnp.allclose(out_big, ref_big, atol=2e-2, rtol=2e-2), "mismatch vs reference (big)"

    print("KERNEL_OK")
</pallas_src>

<mosaic_0001>
module attributes {stable_mosaic.version = 11 : i64} {
  func.func @_traj_embedding_kernel(%arg0: i32, %arg1: memref<16x3xf32, #tpu.memory_space<vmem>>, %arg2: memref<16x256xf32, #tpu.memory_space<vmem>>, %arg3: memref<3x128xf32, #tpu.memory_space<vmem>>, %arg4: memref<1x128xf32, #tpu.memory_space<vmem>>, %arg5: memref<256x128xbf16, #tpu.memory_space<vmem>>, %arg6: memref<1x128xf32, #tpu.memory_space<vmem>>, %arg7: memref<128x128xbf16, #tpu.memory_space<vmem>>, %arg8: memref<128x128xbf16, #tpu.memory_space<vmem>>, %arg9: memref<1x128xf32, #tpu.memory_space<vmem>>, %arg10: memref<16x128xf32, #tpu.memory_space<vmem>>) attributes {dimension_semantics = [#tpu.dimension_semantics<parallel>], iteration_bounds = array<i64: 1>, scalar_prefetch = 0 : i64, scratch_operands = 0 : i64, tpu.core_type = #tpu.core_type<tc>, window_params = [{transform_indices = @transform_0, window_bounds = array<i64: 16, 3>}, {transform_indices = @transform_1, window_bounds = array<i64: 16, 256>}, {pipeline_mode = #tpu.pipeline_mode<synchronous>, transform_indices = @transform_2, window_bounds = array<i64: 3, 128>}, {pipeline_mode = #tpu.pipeline_mode<synchronous>, transform_indices = @transform_3, window_bounds = array<i64: 1, 128>}, {pipeline_mode = #tpu.pipeline_mode<synchronous>, transform_indices = @transform_4, window_bounds = array<i64: 256, 128>}, {pipeline_mode = #tpu.pipeline_mode<synchronous>, transform_indices = @transform_5, window_bounds = array<i64: 1, 128>}, {pipeline_mode = #tpu.pipeline_mode<synchronous>, transform_indices = @transform_6, window_bounds = array<i64: 128, 128>}, {pipeline_mode = #tpu.pipeline_mode<synchronous>, transform_indices = @transform_7, window_bounds = array<i64: 128, 128>}, {pipeline_mode = #tpu.pipeline_mode<synchronous>, transform_indices = @transform_8, window_bounds = array<i64: 1, 128>}, {transform_indices = @transform_9, window_bounds = array<i64: 16, 128>}]} {
    %c0 = arith.constant 0 : index
    %c0_0 = arith.constant 0 : index
    %0 = vector.load %arg1[%c0, %c0_0] : memref<16x3xf32, #tpu.memory_space<vmem>>, vector<16x3xf32>
    %c0_1 = arith.constant 0 : index
    %c0_2 = arith.constant 0 : index
    %1 = vector.load %arg3[%c0_1, %c0_2] : memref<3x128xf32, #tpu.memory_space<vmem>>, vector<3x128xf32>
    %cst = arith.constant dense<0.000000e+00> : vector<16x128xf32>
    %2 = tpu.matmul %0, %1, %cst {dimension_numbers = #tpu.dot_dimension_numbers<[1], [0], [0], [1], [0, 0, 1, 1], [], []>} : vector<16x3xf32>, vector<3x128xf32>, vector<16x128xf32> -> vector<16x128xf32>
    %c0_3 = arith.constant 0 : index
    %c0_4 = arith.constant 0 : index
    %3 = vector.load %arg4[%c0_3, %c0_4] : memref<1x128xf32, #tpu.memory_space<vmem>>, vector<1x128xf32>
    %4 = vector.broadcast %3 : vector<1x128xf32> to vector<16x128xf32>
    %5 = arith.addf %2, %4 : vector<16x128xf32>
    %cst_5 = arith.constant 0.00999999977 : f32
    %6 = vector.broadcast %cst_5 : f32 to vector<16x128xf32>
    %7 = arith.mulf %6, %5 : vector<16x128xf32>
    %8 = arith.maximumf %5, %7 : vector<16x128xf32>
    %c0_6 = arith.constant 0 : index
    %c0_7 = arith.constant 0 : index
    %9 = vector.load %arg2[%c0_6, %c0_7] : memref<16x256xf32, #tpu.memory_space<vmem>>, vector<16x256xf32>
    %10 = arith.truncf %9 : vector<16x256xf32> to vector<16x256xbf16>
    %c0_8 = arith.constant 0 : index
    %c0_9 = arith.constant 0 : index
    %11 = vector.load %arg5[%c0_8, %c0_9] : memref<256x128xbf16, #tpu.memory_space<vmem>>, vector<256x128xbf16>
    %cst_10 = arith.constant dense<0.000000e+00> : vector<16x128xf32>
    %12 = tpu.matmul %10, %11, %cst_10 {dimension_numbers = #tpu.dot_dimension_numbers<[1], [0], [0], [1], [0, 0, 1, 1], [], []>} : vector<16x256xbf16>, vector<256x128xbf16>, vector<16x128xf32> -> vector<16x128xf32>
    %c0_11 = arith.constant 0 : index
    %c0_12 = arith.constant 0 : index
    %13 = vector.load %arg6[%c0_11, %c0_12] : memref<1x128xf32, #tpu.memory_space<vmem>>, vector<1x128xf32>
    %14 = vector.broadcast %13 : vector<1x128xf32> to vector<16x128xf32>
    %15 = arith.addf %12, %14 : vector<16x128xf32>
    %cst_13 = arith.constant 0.00999999977 : f32
    %16 = vector.broadcast %cst_13 : f32 to vector<16x128xf32>
    %17 = arith.mulf %16, %15 : vector<16x128xf32>
    %18 = arith.maximumf %15, %17 : vector<16x128xf32>
    %19 = arith.truncf %8 : vector<16x128xf32> to vector<16x128xbf16>
    %c0_14 = arith.constant 0 : index
    %c0_15 = arith.constant 0 : index
    %20 = vector.load %arg7[%c0_14, %c0_15] : memref<128x128xbf16, #tpu.memory_space<vmem>>, vector<128x128xbf16>
    %cst_16 = arith.constant dense<0.000000e+00> : vector<16x128xf32>
    %21 = tpu.matmul %19, %20, %cst_16 {dimension_numbers = #tpu.dot_dimension_numbers<[1], [0], [0], [1], [0, 0, 1, 1], [], []>} : vector<16x128xbf16>, vector<128x128xbf16>, vector<16x128xf32> -> vector<16x128xf32>
    %22 = arith.truncf %18 : vector<16x128xf32> to vector<16x128xbf16>
    %c0_17 = arith.constant 0 : index
    %c0_18 = arith.constant 0 : index
    %23 = vector.load %arg8[%c0_17, %c0_18] : memref<128x128xbf16, #tpu.memory_space<vmem>>, vector<128x128xbf16>
    %cst_19 = arith.constant dense<0.000000e+00> : vector<16x128xf32>
    %24 = tpu.matmul %22, %23, %cst_19 {dimension_numbers = #tpu.dot_dimension_numbers<[1], [0], [0], [1], [0, 0, 1, 1], [], []>} : vector<16x128xbf16>, vector<128x128xbf16>, vector<16x128xf32> -> vector<16x128xf32>
    %25 = arith.addf %21, %24 : vector<16x128xf32>
    %c0_20 = arith.constant 0 : index
    %c0_21 = arith.constant 0 : index
    %26 = vector.load %arg9[%c0_20, %c0_21] : memref<1x128xf32, #tpu.memory_space<vmem>>, vector<1x128xf32>
    %27 = vector.broadcast %26 : vector<1x128xf32> to vector<16x128xf32>
    %28 = arith.addf %25, %27 : vector<16x128xf32>
    %cst_22 = arith.constant 0.00999999977 : f32
    %29 = vector.broadcast %cst_22 : f32 to vector<16x128xf32>
    %30 = arith.mulf %29, %28 : vector<16x128xf32>
    %31 = arith.maximumf %28, %30 : vector<16x128xf32>
    %c0_23 = arith.constant 0 : index
    %c0_24 = arith.constant 0 : index
    %32 = vector.load %arg10[%c0_23, %c0_24] : memref<16x128xf32, #tpu.memory_space<vmem>>, vector<16x128xf32>
    tpu.vector_store %arg10[%c0_23, %c0_24], %31 {strides = array<i32>} : memref<16x128xf32, #tpu.memory_space<vmem>>, vector<16x128xf32>,
    return
  }
  func.func @transform_0(%arg0: i32) -> (i32, i32) {
    %c0_i32 = arith.constant 0 : i32
    %c0_i32_0 = arith.constant 0 : i32
    return %arg0, %c0_i32 : i32, i32
  }
  func.func @transform_1(%arg0: i32) -> (i32, i32) {
    %c0_i32 = arith.constant 0 : i32
    %c0_i32_0 = arith.constant 0 : i32
    return %arg0, %c0_i32 : i32, i32
  }
  func.func @transform_2(%arg0: i32) -> (i32, i32) {
    %c0_i32 = arith.constant 0 : i32
    %c0_i32_0 = arith.constant 0 : i32
    %c0_i32_1 = arith.constant 0 : i32
    return %c0_i32, %c0_i32_0 : i32, i32
  }
  func.func @transform_3(%arg0: i32) -> (i32, i32) {
    %c0_i32 = arith.constant 0 : i32
    %c0_i32_0 = arith.constant 0 : i32
    %c0_i32_1 = arith.constant 0 : i32
    return %c0_i32, %c0_i32_0 : i32, i32
  }
  func.func @transform_4(%arg0: i32) -> (i32, i32) {
    %c0_i32 = arith.constant 0 : i32
    %c0_i32_0 = arith.constant 0 : i32
    %c0_i32_1 = arith.constant 0 : i32
    return %c0_i32, %c0_i32_0 : i32, i32
  }
  func.func @transform_5(%arg0: i32) -> (i32, i32) {
    %c0_i32 = arith.constant 0 : i32
    %c0_i32_0 = arith.constant 0 : i32
    %c0_i32_1 = arith.constant 0 : i32
    return %c0_i32, %c0_i32_0 : i32, i32
  }
  func.func @transform_6(%arg0: i32) -> (i32, i32) {
    %c0_i32 = arith.constant 0 : i32
    %c0_i32_0 = arith.constant 0 : i32
    %c0_i32_1 = arith.constant 0 : i32
    return %c0_i32, %c0_i32_0 : i32, i32
  }
  func.func @transform_7(%arg0: i32) -> (i32, i32) {
    %c0_i32 = arith.constant 0 : i32
    %c0_i32_0 = arith.constant 0 : i32
    %c0_i32_1 = arith.constant 0 : i32
    return %c0_i32, %c0_i32_0 : i32, i32
  }
  func.func @transform_8(%arg0: i32) -> (i32, i32) {
    %c0_i32 = arith.constant 0 : i32
    %c0_i32_0 = arith.constant 0 : i32
    %c0_i32_1 = arith.constant 0 : i32
    return %c0_i32, %c0_i32_0 : i32, i32
  }
  func.func @transform_9(%arg0: i32) -> (i32, i32) {
    %c0_i32 = arith.constant 0 : i32
    %c0_i32_0 = arith.constant 0 : i32
    return %arg0, %c0_i32 : i32, i32
  }
}

</mosaic_0001>

<llo_original>
// kernel: traj_embedding.1
$region0: #{traj_embedding.1}
  #allocation0 [shape = 'u32[]', space=smem, size = 0x4, offset = 0x4, fixed_abs, tag = 'smem constant byte address 0x4 - core index']
  #allocation1 [shape = 'u32[144,128]{1,0:T(1,128)}', space=vmem, size = 0x12000, scoped, tag = 'internal scratch']
  %s0 = inlined_call_operand.vmem [shape: f32[16,3], index: 0, kind: input, shape index: {}]
  %s1 = inlined_call_operand.vmem [shape: f32[16,256], index: 1, kind: input, shape index: {}]
  %s2 = inlined_call_operand.vmem [shape: f32[3,128], index: 2, kind: input, shape index: {}]
  %s3 = inlined_call_operand.vmem [shape: f32[1,128], index: 3, kind: input, shape index: {}]
  %s4 = inlined_call_operand.vmem [shape: bf16[256,128], index: 4, kind: input, shape index: {}]
  %s5 = inlined_call_operand.vmem [shape: f32[1,128], index: 5, kind: input, shape index: {}]
  %s6 = inlined_call_operand.vmem [shape: bf16[128,128], index: 6, kind: input, shape index: {}]
  %s7 = inlined_call_operand.vmem [shape: bf16[128,128], index: 7, kind: input, shape index: {}]
  %s8 = inlined_call_operand.vmem [shape: f32[1,128], index: 8, kind: input, shape index: {}]
  %s9 = inlined_call_operand.hbm [shape: f32[16,128], index: 9, kind: output, shape index: {}]
  %s10 = sld [smem:[#allocation0]]
  $region46: #{traj_embedding.1} parent=0
    _
  %s12 = ssub.s32 1, %s10
  %s13 = scalar_select 0, %s12, %s10
  $region1: #{traj_embedding.1} parent=0
    #allocation2 [shape = 'u8[8192]{0}', space=vmem, size = 0x2000, scoped, tag = 'output window, operand 0, single buffered']
    #allocation3 [shape = 's32[1]{0}', space=sflag, size = 0x4, scoped, tag = 'scoped memory for traj_embedding.1']
    %14 = vsyncpa [#allocation3], 0
    // Predicated region
    $region2: #{traj_embedding.1} parent=1 // pred_check
      _
    $region3: #{traj_embedding.1} parent=1 // pred_check_branch
      %16 = sbr.rel (0) target = $region5
    $region4: #{traj_embedding.1} parent=1 // pred_region
      _
    $region5: #{traj_embedding.1} parent=1 // pred_fallthru
      _
    // Predicated region
    $region6: #{traj_embedding.1} parent=1 // pred_check
      _
    $region7: #{traj_embedding.1} parent=1 // pred_check_branch
      %18 = sbr.rel (0) target = $region9
    $region8: #{traj_embedding.1} parent=1 // pred_region
      _
    $region9: #{traj_embedding.1} parent=1 // pred_fallthru
      _
    // Predicated region
    $region10: #{traj_embedding.1} parent=1 // pred_check
      _
    $region11: #{traj_embedding.1} parent=1 // pred_check_branch
      %20 = sbr.rel (0) target = $region13
    $region12: #{traj_embedding.1} parent=1 // pred_region
      _
    $region13: #{traj_embedding.1} parent=1 // pred_fallthru
      _
    // Predicated region
    $region14: #{traj_embedding.1} parent=1 // pred_check
      _
    $region15: #{traj_embedding.1} parent=1 // pred_check_branch
      %22 = sbr.rel (0) target = $region17
    $region16: #{traj_embedding.1} parent=1 // pred_region
      _
    $region17: #{traj_embedding.1} parent=1 // pred_fallthru
      _
    // Predicated region
    $region18: #{traj_embedding.1} parent=1 // pred_check
      _
    $region19: #{traj_embedding.1} parent=1 // pred_check_branch
      %24 = sbr.rel (0) target = $region21
    $region20: #{traj_embedding.1} parent=1 // pred_region
      _
    $region21: #{traj_embedding.1} parent=1 // pred_fallthru
      _
    // Predicated region
    $region22: #{traj_embedding.1} parent=1 // pred_check
      _
    $region23: #{traj_embedding.1} parent=1 // pred_check_branch
      %26 = sbr.rel (0) target = $region25
    $region24: #{traj_embedding.1} parent=1 // pred_region
      _
    $region25: #{traj_embedding.1} parent=1 // pred_fallthru
      _
    // Predicated region
    $region26: #{traj_embedding.1} parent=1 // pred_check
      _
    $region27: #{traj_embedding.1} parent=1 // pred_check_branch
      %28 = sbr.rel (0) target = $region29
    $region28: #{traj_embedding.1} parent=1 // pred_region
      _
    $region29: #{traj_embedding.1} parent=1 // pred_fallthru
      _
    // Predicated region
    $region30: #{traj_embedding.1} parent=1 // pred_check
      _
    $region31: #{traj_embedding.1} parent=1 // pred_check_branch
      %30 = sbr.rel (0) target = $region33
    $region32: #{traj_embedding.1} parent=1 // pred_region
      _
    $region33: #{traj_embedding.1} parent=1 // pred_fallthru
      _
    // Predicated region
    $region34: #{traj_embedding.1} parent=1 // pred_check
      _
    $region35: #{traj_embedding.1} parent=1 // pred_check_branch
      %32 = sbr.rel (0) target = $region37
    $region36: #{traj_embedding.1} parent=1 // pred_region
      _
    $region37: #{traj_embedding.1} parent=1 // pred_fallthru
      _
    %v34 = vld [vmem:[%s0] sm:$0xff]
    %v35 = vld [vmem:[%s0 + $0x8] sm:$0xff]
    %v36 = vld [vmem:[%s2] sm:$0x7]
    %v37 = vld [vmem:[%s3] sm:$0x1]
    %v39 = vlaneseq
    %v40 = vshrl.u32 %v39, 7
    %v41 = vsub.s32 0, %v40
    %v42 = vrot.slane %v37, %v41
    %vm44 = vcmask 23552
    %v46 = vsel %vm44, %v34, 0
    %v49 = vsel %vm44, %v35, 0
    %vm51 = vcmask 1042432
    %v53 = vsel %vm51, %v36, 0
    %55 = vmatprep.subr.mxu0 0.0
    %56 = vmatpush1.msra.mxu0 %v53
    %57 = vmatprep.subr.mxu0 0.0
    %58 = vmatpush1.msra.mxu0 0.0
    %59 = vmatprep.subr.mxu0 0.0
    %60 = vmatpush1.msra.mxu0 0.0
    %61 = vmatprep.subr.mxu0 0.0
    %62 = vmatpush1.msra.mxu0 0.0
    %63 = vmatprep.subr.mxu0 0.0
    %64 = vmatpush1.msra.mxu0 0.0
    %65 = vmatprep.subr.mxu0 0.0
    %66 = vmatpush1.msra.mxu0 0.0
    %67 = vmatprep.subr.mxu0 0.0
    %68 = vmatpush1.msra.mxu0 0.0
    %69 = vmatprep.subr.mxu0 0.0
    %70 = vmatpush1.msra.mxu0 0.0
    %71 = vmatprep.subr.mxu0 0.0
    %72 = vmatpush1.msra.mxu0 0.0
    %73 = vmatprep.subr.mxu0 0.0
    %74 = vmatpush1.msra.mxu0 0.0
    %75 = vmatprep.subr.mxu0 0.0
    %76 = vmatpush1.msra.mxu0 0.0
    %77 = vmatprep.subr.mxu0 0.0
    %78 = vmatpush1.msra.mxu0 0.0
    %79 = vmatprep.subr.mxu0 0.0
    %80 = vmatpush1.msra.mxu0 0.0
    %81 = vmatprep.subr.mxu0 0.0
    %82 = vmatpush1.msra.mxu0 0.0
    %83 = vmatprep.subr.mxu0 0.0
    %84 = vmatpush1.msra.mxu0 0.0
    %85 = vmatprep.subr.mxu0 0.0
    %86 = vmatpush1.msra.mxu0 0.0
    %87 = vmatprep.subr.mxu0 0.0
    %88 = vmatpush1.msra.mxu0 0.0
    %89 = vmatprep.subr.mxu0 0.0
    %90 = vmatpush1.msra.mxu0 0.0
    %91 = vmatprep.subr.mxu0 0.0
    %92 = vmatpush1.msra.mxu0 0.0
    %93 = vmatprep.subr.mxu0 0.0
    %94 = vmatpush1.msra.mxu0 0.0
    %95 = vmatprep.subr.mxu0 0.0
    %96 = vmatpush1.msra.mxu0 0.0
    %97 = vmatprep.subr.mxu0 0.0
    %98 = vmatpush1.msra.mxu0 0.0
    %99 = vmatprep.subr.mxu0 0.0
    %100 = vmatpush1.msra.mxu0 0.0
    %101 = vmatprep.subr.mxu0 0.0
    %102 = vmatpush1.msra.mxu0 0.0
    %103 = vmatprep.subr.mxu0 0.0
    %104 = vmatpush1.msra.mxu0 0.0
    %105 = vmatprep.subr.mxu0 0.0
    %106 = vmatpush1.msra.mxu0 0.0
    %107 = vmatprep.subr.mxu0 0.0
    %108 = vmatpush1.msra.mxu0 0.0
    %109 = vmatprep.subr.mxu0 0.0
    %110 = vmatpush1.msra.mxu0 0.0
    %111 = vmatprep.subr.mxu0 0.0
    %112 = vmatpush1.msra.mxu0 0.0
    %113 = vmatprep.subr.mxu0 0.0
    %114 = vmatpush1.msra.mxu0 0.0
    %115 = vmatprep.subr.mxu0 0.0
    %116 = vmatpush1.msra.mxu0 0.0
    %117 = vmatprep.subr.mxu0 0.0
    %118 = vmatpush1.msra.mxu0 0.0
    %119 = vmatprep.mubr.f32.mxu0 0.0
    %120 = vmatmul.mubr.f32.gmra.mrb[0].mxu0 %v46
    %v121 = vpop.f32.mrb[0].mxu0
    %v122 = vadd.f32 %v42, %v121
    %v123 = vpop.f32.mrb[0].mxu0
    %124 = vmatprep.mubr.f32.mxu0 0.0
    %125 = vmatmul.mubr.f32.gmra.mrb[0].mxu0 %v49
    %v126 = vpop.f32.mrb[0].mxu0
    %v127 = vadd.f32 %v42, %v126
    %v128 = vpop.f32.mrb[0].mxu0
    %129 = vdwg.mxu0
    %v130 = vmul.f32 %v122, 0.01
    %v131 = vmul.f32 %v127, 0.01
    %v132 = vmax.f32 %v122, %v130
    %v133 = vmax.f32 %v127, %v131
    %v134 = vld [vmem:[%s1] sm:$0xff]
    %v135 = vld [vmem:[%s1 + $0x8] sm:$0xff]
    %v136 = vld [vmem:[%s1 + $0x10] sm:$0xff]
    %v137 = vld [vmem:[%s1 + $0x18] sm:$0xff]
    %v138 = vpack.c.bf16 %v136, %v134
    %v139 = vpack.c.bf16 %v137, %v135
    %v140 = vld [vmem:[%s4] sm:$0xf]
    %v141 = vld [vmem:[%s4 + $0x4] sm:$0xf]
    %v142 = vld [vmem:[%s4 + $0x8] sm:$0xf]
    %v143 = vld [vmem:[%s4 + $0xc] sm:$0xf]
    %v144 = vld [vmem:[%s4 + $0x10] sm:$0xf]
    %v145 = vld [vmem:[%s4 + $0x14] sm:$0xf]
    %v146 = vld [vmem:[%s4 + $0x18] sm:$0xf]
    %v147 = vld [vmem:[%s4 + $0x1c] sm:$0xf]
    %v148 = vld [vmem:[%s4 + $0x20] sm:$0xf]
    %v149 = vld [vmem:[%s4 + $0x24] sm:$0xf]
    %v150 = vld [vmem:[%s4 + $0x28] sm:$0xf]
    %v151 = vld [vmem:[%s4 + $0x2c] sm:$0xf]
    %v152 = vld [vmem:[%s4 + $0x30] sm:$0xf]
    %v153 = vld [vmem:[%s4 + $0x34] sm:$0xf]
    %v154 = vld [vmem:[%s4 + $0x38] sm:$0xf]
    %v155 = vld [vmem:[%s4 + $0x3c] sm:$0xf]
    %v156 = vld [vmem:[%s4 + $0x40] sm:$0xf]
    %v157 = vld [vmem:[%s4 + $0x44] sm:$0xf]
    %v158 = vld [vmem:[%s4 + $0x48] sm:$0xf]
    %v159 = vld [vmem:[%s4 + $0x4c] sm:$0xf]
    %v160 = vld [vmem:[%s4 + $0x50] sm:$0xf]
    %v161 = vld [vmem:[%s4 + $0x54] sm:$0xf]
    %v162 = vld [vmem:[%s4 + $0x58] sm:$0xf]
    %v163 = vld [vmem:[%s4 + $0x5c] sm:$0xf]
    %v164 = vld [vmem:[%s4 + $0x60] sm:$0xf]
    %v165 = vld [vmem:[%s4 + $0x64] sm:$0xf]
    %v166 = vld [vmem:[%s4 + $0x68] sm:$0xf]
    %v167 = vld [vmem:[%s4 + $0x6c] sm:$0xf]
    %v168 = vld [vmem:[%s4 + $0x70] sm:$0xf]
    %v169 = vld [vmem:[%s4 + $0x74] sm:$0xf]
    %v170 = vld [vmem:[%s4 + $0x78] sm:$0xf]
    %v171 = vld [vmem:[%s4 + $0x7c] sm:$0xf]
    %v172 = vld [vmem:[%s5] sm:$0x1]
    %v174 = vlaneseq
    %v175 = vshrl.u32 %v174, 7
    %v176 = vsub.s32 0, %v175
    %v177 = vrot.slane %v172, %v176
    %v211 = vunpack.c.l.b16 %v140
    %v212 = vunpack.c.l.b16 %v141
    %v213 = vunpack.c.l.b16 %v142
    %v214 = vunpack.c.l.b16 %v143
    %v215 = vunpack.c.l.b16 %v144
    %v216 = vunpack.c.l.b16 %v145
    %v217 = vunpack.c.l.b16 %v146
    %v218 = vunpack.c.l.b16 %v147
    %v219 = vunpack.c.l.b16 %v148
    %v220 = vunpack.c.l.b16 %v149
    %v221 = vunpack.c.l.b16 %v150
    %v222 = vunpack.c.l.b16 %v151
    %v223 = vunpack.c.l.b16 %v152
    %v224 = vunpack.c.l.b16 %v153
    %v225 = vunpack.c.l.b16 %v154
    %v226 = vunpack.c.l.b16 %v155
    %v227 = vunpack.c.l.b16 %v156
    %v228 = vunpack.c.l.b16 %v157
    %v229 = vunpack.c.l.b16 %v158
    %v230 = vunpack.c.l.b16 %v159
    %v231 = vunpack.c.l.b16 %v160
    %v232 = vunpack.c.l.b16 %v161
    %v233 = vunpack.c.l.b16 %v162
    %v234 = vunpack.c.l.b16 %v163
    %v235 = vunpack.c.l.b16 %v164
    %v236 = vunpack.c.l.b16 %v165
    %v237 = vunpack.c.l.b16 %v166
    %v238 = vunpack.c.l.b16 %v167
    %v239 = vunpack.c.l.b16 %v168
    %v240 = vunpack.c.l.b16 %v169
    %v241 = vunpack.c.l.b16 %v170
    %v242 = vunpack.c.l.b16 %v171
    %v243 = vpack.c.b16 %v212, %v211
    %v244 = vpack.c.b16 %v214, %v213
    %v245 = vpack.c.b16 %v216, %v215
    %v246 = vpack.c.b16 %v218, %v217
    %v247 = vpack.c.b16 %v220, %v219
    %v248 = vpack.c.b16 %v222, %v221
    %v249 = vpack.c.b16 %v224, %v223
    %v250 = vpack.c.b16 %v226, %v225
    %v251 = vpack.c.b16 %v228, %v227
    %v252 = vpack.c.b16 %v230, %v229
    %v253 = vpack.c.b16 %v232, %v231
    %v254 = vpack.c.b16 %v234, %v233
    %v255 = vpack.c.b16 %v236, %v235
    %v256 = vpack.c.b16 %v238, %v237
    %v257 = vpack.c.b16 %v240, %v239
    %v258 = vpack.c.b16 %v242, %v241
    %275 = vmatprep.subr.bf16.mxu0 0
    %276 = vmatpush1.bf16.msra.mxu0 %v243
    %277 = vmatprep.subr.bf16.mxu0 0
    %278 = vmatpush1.bf16.msra.mxu0 %v244
    %279 = vmatprep.subr.bf16.mxu0 0
    %280 = vmatpush1.bf16.msra.mxu0 %v245
    %281 = vmatprep.subr.bf16.mxu0 0
    %282 = vmatpush1.bf16.msra.mxu0 %v246
    %283 = vmatprep.subr.bf16.mxu0 0
    %284 = vmatpush1.bf16.msra.mxu0 %v247
    %285 = vmatprep.subr.bf16.mxu0 0
    %286 = vmatpush1.bf16.msra.mxu0 %v248
    %287 = vmatprep.subr.bf16.mxu0 0
    %288 = vmatpush1.bf16.msra.mxu0 %v249
    %289 = vmatprep.subr.bf16.mxu0 0
    %290 = vmatpush1.bf16.msra.mxu0 %v250
    %291 = vmatprep.subr.bf16.mxu0 0
    %292 = vmatpush1.bf16.msra.mxu0 %v251
    %293 = vmatprep.subr.bf16.mxu0 0
    %294 = vmatpush1.bf16.msra.mxu0 %v252
    %295 = vmatprep.subr.bf16.mxu0 0
    %296 = vmatpush1.bf16.msra.mxu0 %v253
    %297 = vmatprep.subr.bf16.mxu0 0
    %298 = vmatpush1.bf16.msra.mxu0 %v254
    %299 = vmatprep.subr.bf16.mxu0 0
    %300 = vmatpush1.bf16.msra.mxu0 %v255
    %301 = vmatprep.subr.bf16.mxu0 0
    %302 = vmatpush1.bf16.msra.mxu0 %v256
    %303 = vmatprep.subr.bf16.mxu0 0
    %304 = vmatpush1.bf16.msra.mxu0 %v257
    %305 = vmatprep.subr.bf16.mxu0 0
    %306 = vmatpush1.bf16.msra.mxu0 %v258
    %307 = vmatprep.mubr.bf16.mxu0 %v139
    %308 = vmatmul.mubr.bf16.gmra.mrb[0].mxu0 %v138
    %v309 = vpop.f32.mrb[0].mxu0
    %v310 = vadd.f32 %v177, %v309
    %v311 = vpop.f32.mrb[0].mxu0
    %v312 = vpop.f32.mrb[0].mxu0
    %v313 = vadd.f32 %v177, %v312
    %v314 = vpop.f32.mrb[0].mxu0
    %315 = vdwg.mxu0
    %v316 = vmul.f32 %v310, 0.01
    %v317 = vmul.f32 %v313, 0.01
    %v318 = vmax.f32 %v310, %v316
    %v319 = vmax.f32 %v313, %v317
    %v320 = vpack.c.bf16 %v133, %v132
    %v321 = vld [vmem:[%s6] sm:$0xf]
    %v322 = vld [vmem:[%s6 + $0x4] sm:$0xf]
    %v323 = vld [vmem:[%s6 + $0x8] sm:$0xf]
    %v324 = vld [vmem:[%s6 + $0xc] sm:$0xf]
    %v325 = vld [vmem:[%s6 + $0x10] sm:$0xf]
    %v326 = vld [vmem:[%s6 + $0x14] sm:$0xf]
    %v327 = vld [vmem:[%s6 + $0x18] sm:$0xf]
    %v328 = vld [vmem:[%s6 + $0x1c] sm:$0xf]
    %v329 = vld [vmem:[%s6 + $0x20] sm:$0xf]
    %v330 = vld [vmem:[%s6 + $0x24] sm:$0xf]
    %v331 = vld [vmem:[%s6 + $0x28] sm:$0xf]
    %v332 = vld [vmem:[%s6 + $0x2c] sm:$0xf]
    %v333 = vld [vmem:[%s6 + $0x30] sm:$0xf]
    %v334 = vld [vmem:[%s6 + $0x34] sm:$0xf]
    %v335 = vld [vmem:[%s6 + $0x38] sm:$0xf]
    %v336 = vld [vmem:[%s6 + $0x3c] sm:$0xf]
    %v337 = vpack.c.bf16 %v319, %v318
    %v338 = vld [vmem:[%s7] sm:$0xf]
    %v339 = vld [vmem:[%s7 + $0x4] sm:$0xf]
    %v340 = vld [vmem:[%s7 + $0x8] sm:$0xf]
    %v341 = vld [vmem:[%s7 + $0xc] sm:$0xf]
    %v342 = vld [vmem:[%s7 + $0x10] sm:$0xf]
    %v343 = vld [vmem:[%s7 + $0x14] sm:$0xf]
    %v344 = vld [vmem:[%s7 + $0x18] sm:$0xf]
    %v345 = vld [vmem:[%s7 + $0x1c] sm:$0xf]
    %v346 = vld [vmem:[%s7 + $0x20] sm:$0xf]
    %v347 = vld [vmem:[%s7 + $0x24] sm:$0xf]
    %v348 = vld [vmem:[%s7 + $0x28] sm:$0xf]
    %v349 = vld [vmem:[%s7 + $0x2c] sm:$0xf]
    %v350 = vld [vmem:[%s7 + $0x30] sm:$0xf]
    %v351 = vld [vmem:[%s7 + $0x34] sm:$0xf]
    %v352 = vld [vmem:[%s7 + $0x38] sm:$0xf]
    %v353 = vld [vmem:[%s7 + $0x3c] sm:$0xf]
    %v370 = vunpack.c.l.b16 %v338
    %v371 = vunpack.c.l.b16 %v339
    %v372 = vunpack.c.l.b16 %v340
    %v373 = vunpack.c.l.b16 %v341
    %v374 = vunpack.c.l.b16 %v342
    %v375 = vunpack.c.l.b16 %v343
    %v376 = vunpack.c.l.b16 %v344
    %v377 = vunpack.c.l.b16 %v345
    %v378 = vunpack.c.l.b16 %v346
    %v379 = vunpack.c.l.b16 %v347
    %v380 = vunpack.c.l.b16 %v348
    %v381 = vunpack.c.l.b16 %v349
    %v382 = vunpack.c.l.b16 %v350
    %v383 = vunpack.c.l.b16 %v351
    %v384 = vunpack.c.l.b16 %v352
    %v385 = vunpack.c.l.b16 %v353
    %v386 = vpack.c.b16 %v371, %v370
    %v387 = vpack.c.b16 %v373, %v372
    %v388 = vpack.c.b16 %v375, %v374
    %v389 = vpack.c.b16 %v377, %v376
    %v390 = vpack.c.b16 %v379, %v378
    %v391 = vpack.c.b16 %v381, %v380
    %v392 = vpack.c.b16 %v383, %v382
    %v393 = vpack.c.b16 %v385, %v384
    %402 = vmatprep.subr.bf16.mxu0 0
    %403 = vmatpush1.bf16.msra.mxu0 %v386
    %404 = vmatprep.subr.bf16.mxu0 0
    %405 = vmatpush1.bf16.msra.mxu0 %v387
    %406 = vmatprep.subr.bf16.mxu0 0
    %407 = vmatpush1.bf16.msra.mxu0 %v388
    %408 = vmatprep.subr.bf16.mxu0 0
    %409 = vmatpush1.bf16.msra.mxu0 %v389
    %410 = vmatprep.subr.bf16.mxu0 0
    %411 = vmatpush1.bf16.msra.mxu0 %v390
    %412 = vmatprep.subr.bf16.mxu0 0
    %413 = vmatpush1.bf16.msra.mxu0 %v391
    %414 = vmatprep.subr.bf16.mxu0 0
    %415 = vmatpush1.bf16.msra.mxu0 %v392
    %416 = vmatprep.subr.bf16.mxu0 0
    %417 = vmatpush1.bf16.msra.mxu0 %v393
    %418 = vmatprep.subr.bf16.mxu0 0
    %419 = vmatpush1.bf16.msra.mxu0 0
    %420 = vmatprep.subr.bf16.mxu0 0
    %421 = vmatpush1.bf16.msra.mxu0 0
    %422 = vmatprep.subr.bf16.mxu0 0
    %423 = vmatpush1.bf16.msra.mxu0 0
    %424 = vmatprep.subr.bf16.mxu0 0
    %425 = vmatpush1.bf16.msra.mxu0 0
    %426 = vmatprep.subr.bf16.mxu0 0
    %427 = vmatpush1.bf16.msra.mxu0 0
    %428 = vmatprep.subr.bf16.mxu0 0
    %429 = vmatpush1.bf16.msra.mxu0 0
    %430 = vmatprep.subr.bf16.mxu0 0
    %431 = vmatpush1.bf16.msra.mxu0 0
    %432 = vmatprep.subr.bf16.mxu0 0
    %433 = vmatpush1.bf16.msra.mxu0 0
    %434 = vmatprep.mubr.bf16.mxu0 0
    %435 = vmatmul.mubr.bf16.gmra.mrb[0].mxu0 %v337
    %v436 = vpop.f32.mrb[0].mxu0
    %v437 = vadd.f32 0.0, %v436
    %v438 = vpop.f32.mrb[0].mxu0
    %v439 = vpop.f32.mrb[0].mxu0
    %v440 = vadd.f32 0.0, %v439
    %v441 = vpop.f32.mrb[0].mxu0
    %442 = vdwg.mxu0
    %v459 = vunpack.c.l.b16 %v321
    %v460 = vunpack.c.l.b16 %v322
    %v461 = vunpack.c.l.b16 %v323
    %v462 = vunpack.c.l.b16 %v324
    %v463 = vunpack.c.l.b16 %v325
    %v464 = vunpack.c.l.b16 %v326
    %v465 = vunpack.c.l.b16 %v327
    %v466 = vunpack.c.l.b16 %v328
    %v467 = vunpack.c.l.b16 %v329
    %v468 = vunpack.c.l.b16 %v330
    %v469 = vunpack.c.l.b16 %v331
    %v470 = vunpack.c.l.b16 %v332
    %v471 = vunpack.c.l.b16 %v333
    %v472 = vunpack.c.l.b16 %v334
    %v473 = vunpack.c.l.b16 %v335
    %v474 = vunpack.c.l.b16 %v336
    %v475 = vpack.c.b16 %v460, %v459
    %v476 = vpack.c.b16 %v462, %v461
    %v477 = vpack.c.b16 %v464, %v463
    %v478 = vpack.c.b16 %v466, %v465
    %v479 = vpack.c.b16 %v468, %v467
    %v480 = vpack.c.b16 %v470, %v469
    %v481 = vpack.c.b16 %v472, %v471
    %v482 = vpack.c.b16 %v474, %v473
    %491 = vmatprep.subr.bf16.mxu0 0
    %492 = vmatpush1.bf16.msra.mxu0 %v475
    %493 = vmatprep.subr.bf16.mxu0 0
    %494 = vmatpush1.bf16.msra.mxu0 %v476
    %495 = vmatprep.subr.bf16.mxu0 0
    %496 = vmatpush1.bf16.msra.mxu0 %v477
    %497 = vmatprep.subr.bf16.mxu0 0
    %498 = vmatpush1.bf16.msra.mxu0 %v478
    %499 = vmatprep.subr.bf16.mxu0 0
    %500 = vmatpush1.bf16.msra.mxu0 %v479
    %501 = vmatprep.subr.bf16.mxu0 0
    %502 = vmatpush1.bf16.msra.mxu0 %v480
    %503 = vmatprep.subr.bf16.mxu0 0
    %504 = vmatpush1.bf16.msra.mxu0 %v481
    %505 = vmatprep.subr.bf16.mxu0 0
    %506 = vmatpush1.bf16.msra.mxu0 %v482
    %507 = vmatprep.subr.bf16.mxu0 0
    %508 = vmatpush1.bf16.msra.mxu0 0
    %509 = vmatprep.subr.bf16.mxu0 0
    %510 = vmatpush1.bf16.msra.mxu0 0
    %511 = vmatprep.subr.bf16.mxu0 0
    %512 = vmatpush1.bf16.msra.mxu0 0
    %513 = vmatprep.subr.bf16.mxu0 0
    %514 = vmatpush1.bf16.msra.mxu0 0
    %515 = vmatprep.subr.bf16.mxu0 0
    %516 = vmatpush1.bf16.msra.mxu0 0
    %517 = vmatprep.subr.bf16.mxu0 0
    %518 = vmatpush1.bf16.msra.mxu0 0
    %519 = vmatprep.subr.bf16.mxu0 0
    %520 = vmatpush1.bf16.msra.mxu0 0
    %521 = vmatprep.subr.bf16.mxu0 0
    %522 = vmatpush1.bf16.msra.mxu0 0
    %523 = vmatprep.mubr.bf16.mxu0 0
    %524 = vmatmul.mubr.bf16.gmra.mrb[0].mxu0 %v320
    %v525 = vpop.f32.mrb[0].mxu0
    %v526 = vadd.f32 %v437, %v525
    %v527 = vpop.f32.mrb[0].mxu0
    %v528 = vpop.f32.mrb[0].mxu0
    %v529 = vadd.f32 %v440, %v528
    %v530 = vpop.f32.mrb[0].mxu0
    %531 = vdwg.mxu0
    %v532 = vld [vmem:[%s8] sm:$0x1]
    %v534 = vlaneseq
    %v535 = vshrl.u32 %v534, 7
    %v536 = vsub.s32 0, %v535
    %v537 = vrot.slane %v532, %v536
    %v539 = vadd.f32 %v526, %v537
    %v540 = vadd.f32 %v529, %v537
    %v541 = vmul.f32 %v539, 0.01
    %v542 = vmul.f32 %v540, 0.01
    %v543 = vmax.f32 %v539, %v541
    %v544 = vmax.f32 %v540, %v542
    %545 = vst [vmem:[#allocation2] sm:$0xff] %v543
    %546 = vst [vmem:[#allocation2 + $0x8] sm:$0xff] %v544
    // Predicated region
    $region38: #{traj_embedding.1} parent=1 // pred_check
      _
    $region39: #{traj_embedding.1} parent=1 // pred_check_branch
      %548 = sbr.rel (0) target = $region41
    $region40: #{traj_embedding.1} parent=1 // pred_region
      %s550 = ssub.s32 256, 256
      %551 = vsyncadd [#allocation3], %s550
      %s552 = sshll.u32 [#allocation2], 4
      %s553 = int_to_ptr.vmem [resolvable:$true] %s552
      %558 = dma.vmem_to_hbm [thread:$0]  %s553, 256, %s9, [#allocation3], 128, 128, 8
    $region41: #{traj_embedding.1} parent=1 // pred_fallthru
      _
    // Predicated region
    $region42: #{traj_embedding.1} parent=1 // pred_check
      _
    $region43: #{traj_embedding.1} parent=1 // pred_check_branch
      %560 = sbr.rel (0) target = $region45
    $region44: #{traj_embedding.1} parent=1 // pred_region
      %561 = dma.done [#allocation3], 256
    $region45: #{traj_embedding.1} parent=1 // pred_fallthru
      _
    %562 = vsyncpa [#allocation3], 1

</llo_original>
